<compile_context>
chip_gen: v7x
topology: tpu7x:2x2x1
jax: 0.10.0
libtpu: 0.0.40
codegen_flags: <defaults>
</compile_context>

<pallas_src>
import functools
import math

import jax
import jax.numpy as jnp
from jax.experimental import pallas as pl
from jax.experimental.pallas import tpu as pltpu


_VMEM_LIMIT_BYTES = 48 * 1024 * 1024      # conservative: fits v7x (64 MiB) with headroom
_X_TILE_BUDGET_BYTES = 16 * 1024 * 1024   # per x buffer; BlockSpec double-buffers => ~32 MiB


def _round_up(x, m):
    return ((x + m - 1) // m) * m


def _choose_tm(n, v, itemsize, max_rows_per_tile):
    """Largest row tile (multiple of 8) whose double-buffered x block fits the VMEM budget."""
    rows_budget = max(8, _X_TILE_BUDGET_BYTES // max(1, v * itemsize))
    tm = min(max_rows_per_tile, rows_budget, _round_up(n, 8))
    return max(8, (tm // 8) * 8)


def _label_smoothing_kernel(x_ref, tgt_ref, out_ref, *, n_rows, tm, padding_idx,
                            confidence, smooth_val, const_term):
    # x_ref: (TM, V) log-probs in the streamed dtype; cast to f32 right after load.
    x = x_ref[...].astype(jnp.float32)
    tgt = tgt_ref[...]                                           # (TM, 1) int32

    col = jax.lax.broadcasted_iota(jnp.int32, x.shape, 1)        # (TM, V)
    row = jax.lax.broadcasted_iota(jnp.int32, tgt.shape, 0)      # (TM, 1)

    # Per-row reductions (XLU). The smoothed-KL loss collapses algebraically to
    #   loss_row = C - confidence*x[t] - smooth_val*(sum_j x[j] - x[t] - x[pad])
    # for rows with t != padding_idx, else 0, where
    #   C = confidence*log(confidence) + (V - 2)*smooth_val*log(smooth_val).
    row_sum = jnp.sum(x, axis=-1, keepdims=True)                           # (TM, 1)
    x_t = jnp.sum(jnp.where(col == tgt, x, 0.0), axis=-1, keepdims=True)   # (TM, 1)
    x_pad = x[:, padding_idx:padding_idx + 1]                              # (TM, 1)

    loss_row = (jnp.float32(const_term)
                - jnp.float32(confidence) * x_t
                - jnp.float32(smooth_val) * (row_sum - x_t - x_pad))

    # Mask padded-target rows and the out-of-range rows of a partial last tile.
    in_bounds = (pl.program_id(0) * tm + row) < n_rows
    valid = in_bounds & (tgt != padding_idx)
    loss_row = jnp.where(valid, loss_row, 0.0)

    # One f32 partial per grid step (row axis stays 'parallel'; wrapper reduces partials).
    out_ref[...] = jnp.broadcast_to(jnp.sum(loss_row), out_ref.shape)


def make_label_smoothing(size, padding_idx, smoothing=0.0, max_rows_per_tile=1024):
    assert size > 2, "label smoothing requires size > 2"
    confidence = 1.0 - smoothing
    smooth_val = smoothing / (size - 2)

    def _xlogx(p):
        return p * math.log(p) if p > 0.0 else 0.0   # 0*log(0) := 0

    const_term = _xlogx(confidence) + (size - 2) * _xlogx(smooth_val)

    def forward(x, target):
        n, v = x.shape
        assert v == size
        tgt2d = target.reshape(n, 1).astype(jnp.int32)

        tm = _choose_tm(n, v, jnp.dtype(x.dtype).itemsize, max_rows_per_tile)
        num_tiles = pl.cdiv(n, tm)
        # TODO(synk): for very large vocabularies also tile V (grid=(tiles_n, tiles_v) with
        # the vocab axis last + 'arbitrary', accumulating row_sum / x_t / x_pad partials).

        kernel = functools.partial(
            _label_smoothing_kernel,
            n_rows=n, tm=tm, padding_idx=padding_idx,
            confidence=confidence, smooth_val=smooth_val, const_term=const_term)

        partials = pl.pallas_call(
            kernel,
            out_shape=jax.ShapeDtypeStruct((num_tiles, 8, 128), jnp.float32),
            grid=(num_tiles,),
            in_specs=[
                pl.BlockSpec((tm, v), lambda i: (i, 0)),   # x rows streamed, double-buffered
                pl.BlockSpec((tm, 1), lambda i: (i, 0)),   # matching target rows
            ],
            out_specs=pl.BlockSpec((1, 8, 128), lambda i: (i, 0, 0)),
            compiler_params=pltpu.CompilerParams(
                dimension_semantics=("parallel",),
                vmem_limit_bytes=_VMEM_LIMIT_BYTES),
        )(x, tgt2d)            # NOTE: no dtype upcast in the wrapper; bf16 streams as bf16.

        return jnp.sum(partials[:, 0, 0])

    return forward


def _reference(x, target, size, padding_idx, smoothing):
    """Pure-JAX reference mirroring the PyTorch module (KLDivLoss, reduction='sum')."""
    x = x.astype(jnp.float32)
    confidence = 1.0 - smoothing
    smooth_val = smoothing / (size - 2)
    n, v = x.shape
    true_dist = jnp.full((n, v), smooth_val, jnp.float32)
    true_dist = true_dist.at[jnp.arange(n), target].set(confidence)
    true_dist = true_dist.at[:, padding_idx].set(0.0)
    true_dist = jnp.where((target == padding_idx)[:, None], 0.0, true_dist)
    safe = jnp.where(true_dist > 0, true_dist, 1.0)
    terms = jnp.where(true_dist > 0, true_dist * (jnp.log(safe) - x), 0.0)
    return jnp.sum(terms)


if __name__ == "__main__":
    size = 512          # vocab size (x.size(1)), lane-dense multiple of 128
    padding_idx = 0
    smoothing = 0.1
    n = 60              # flattened token positions (not a tile multiple -> exercises masked tail)

    key = jax.random.PRNGKey(0)
    kx, kt = jax.random.split(key)
    logits = jax.random.normal(kx, (n, size), jnp.float32)
    x_bf16 = jax.nn.log_softmax(logits, axis=-1).astype(jnp.bfloat16)   # stream bf16
    target = jax.random.randint(kt, (n,), 1, size, jnp.int32)
    target = target.at[3].set(padding_idx)        # include padded positions
    target = target.at[n - 1].set(padding_idx)

    # Multi-tile path (4 row tiles, partial last tile) on bf16 inputs.
    ls_tiled = make_label_smoothing(size, padding_idx, smoothing, max_rows_per_tile=16)
    loss = jax.block_until_ready(ls_tiled(x_bf16, target))
    ref = _reference(x_bf16, target, size, padding_idx, smoothing)
    assert jnp.allclose(loss, ref, rtol=1e-3, atol=1e-2), (loss, ref)

    # Auto tile-size path on f32 inputs.
    ls_auto = make_label_smoothing(size, padding_idx, smoothing)
    x_f32 = jax.nn.log_softmax(logits, axis=-1)
    loss32 = jax.block_until_ready(ls_auto(x_f32, target))
    ref32 = _reference(x_f32, target, size, padding_idx, smoothing)
    assert jnp.allclose(loss32, ref32, rtol=1e-4, atol=1e-3), (loss32, ref32)

    print("KERNEL_OK")
</pallas_src>

<mosaic_0001>
module attributes {stable_mosaic.version = 11 : i64} {
  func.func @_label_smoothing_kernel(%arg0: i32, %arg1: memref<16x512xbf16, #tpu.memory_space<vmem>>, %arg2: memref<16x1xi32, #tpu.memory_space<vmem>>, %arg3: memref<1x8x128xf32, #tpu.memory_space<vmem>>) attributes {dimension_semantics = [#tpu.dimension_semantics<parallel>], iteration_bounds = array<i64: 4>, scalar_prefetch = 0 : i64, scratch_operands = 0 : i64, tpu.core_type = #tpu.core_type<tc>, window_params = [{transform_indices = @transform_0, window_bounds = array<i64: 16, 512>}, {transform_indices = @transform_1, window_bounds = array<i64: 16, 1>}, {transform_indices = @transform_2, window_bounds = array<i64: 1, 8, 128>}]} {
    %c0 = arith.constant 0 : index
    %c0_0 = arith.constant 0 : index
    %0 = vector.load %arg1[%c0, %c0_0] : memref<16x512xbf16, #tpu.memory_space<vmem>>, vector<16x512xbf16>
    %1 = arith.extf %0 : vector<16x512xbf16> to vector<16x512xf32>
    %c0_1 = arith.constant 0 : index
    %c0_2 = arith.constant 0 : index
    %2 = vector.load %arg2[%c0_1, %c0_2] : memref<16x1xi32, #tpu.memory_space<vmem>>, vector<16x1xi32>
    %3 = tpu.iota {dimensions = array<i32: 1>} : vector<16x512xi32>
    %4 = tpu.iota {dimensions = array<i32: 0>} : vector<16x1xi32>
    %cst = arith.constant dense<0.000000e+00> : vector<16xf32>
    %5 = vector.multi_reduction <add>, %1, %cst [1] : vector<16x512xf32> to vector<16xf32>
    %6 = vector.shape_cast %5 : vector<16xf32> to vector<16x1xf32>
    %7 = vector.broadcast %2 : vector<16x1xi32> to vector<16x512xi32>
    %8 = arith.cmpi eq, %3, %7 : vector<16x512xi32>
    %cst_3 = arith.constant 0.000000e+00 : f32
    %9 = vector.broadcast %cst_3 : f32 to vector<16x512xf32>
    %10 = arith.select %8, %1, %9 : vector<16x512xi1>, vector<16x512xf32>
    %cst_4 = arith.constant dense<0.000000e+00> : vector<16xf32>
    %11 = vector.multi_reduction <add>, %10, %cst_4 [1] : vector<16x512xf32> to vector<16xf32>
    %12 = vector.shape_cast %11 : vector<16xf32> to vector<16x1xf32>
    %13 = vector.extract_strided_slice %1 {offsets = [0, 0], sizes = [16, 1], strides = [1, 1]} : vector<16x512xf32> to vector<16x1xf32>
    %cst_5 = arith.constant 0.899999976 : f32
    %14 = vector.broadcast %cst_5 : f32 to vector<16x1xf32>
    %15 = arith.mulf %14, %12 : vector<16x1xf32>
    %cst_6 = arith.constant -0.948524057 : f32
    %16 = vector.broadcast %cst_6 : f32 to vector<16x1xf32>
    %17 = arith.subf %16, %15 : vector<16x1xf32>
    %18 = arith.subf %6, %12 : vector<16x1xf32>
    %19 = arith.subf %18, %13 : vector<16x1xf32>
    %cst_7 = arith.constant 1.96078428E-4 : f32
    %20 = vector.broadcast %cst_7 : f32 to vector<16x1xf32>
    %21 = arith.mulf %20, %19 : vector<16x1xf32>
    %22 = arith.subf %17, %21 : vector<16x1xf32>
    %c16_i32 = arith.constant 16 : i32
    %23 = arith.muli %arg0, %c16_i32 : i32
    %24 = vector.broadcast %23 : i32 to vector<16x1xi32>
    %25 = arith.addi %24, %4 : vector<16x1xi32>
    %c60_i32 = arith.constant 60 : i32
    %26 = vector.broadcast %c60_i32 : i32 to vector<16x1xi32>
    %27 = arith.cmpi slt, %25, %26 : vector<16x1xi32>
    %c0_i32 = arith.constant 0 : i32
    %28 = vector.broadcast %c0_i32 : i32 to vector<16x1xi32>
    %29 = arith.cmpi ne, %2, %28 : vector<16x1xi32>
    %30 = arith.andi %27, %29 : vector<16x1xi1>
    %cst_8 = arith.constant 0.000000e+00 : f32
    %31 = vector.broadcast %cst_8 : f32 to vector<16x1xf32>
    %32 = arith.select %30, %22, %31 : vector<16x1xi1>, vector<16x1xf32>
    %33 = vector.shape_cast %32 : vector<16x1xf32> to vector<1x16x1xf32>
    %cst_9 = arith.constant dense<0.000000e+00> : vector<1xf32>
    %34 = vector.multi_reduction <add>, %33, %cst_9 [1, 2] : vector<1x16x1xf32> to vector<1xf32>
    %35 = vector.shape_cast %34 : vector<1xf32> to vector<1x1x1xf32>
    %36 = vector.extract %35[0, 0, 0] : f32 from vector<1x1x1xf32>
    %37 = vector.broadcast %36 : f32 to vector<1x8x128xf32>
    %c0_10 = arith.constant 0 : index
    %c0_11 = arith.constant 0 : index
    %c0_12 = arith.constant 0 : index
    %38 = vector.load %arg3[%c0_10, %c0_11, %c0_12] : memref<1x8x128xf32, #tpu.memory_space<vmem>>, vector<1x8x128xf32>
    tpu.vector_store %arg3[%c0_10, %c0_11, %c0_12], %37 {strides = array<i32>} : memref<1x8x128xf32, #tpu.memory_space<vmem>>, vector<1x8x128xf32>,
    return
  }
  func.func @transform_0(%arg0: i32) -> (i32, i32) {
    %c0_i32 = arith.constant 0 : i32
    %c0_i32_0 = arith.constant 0 : i32
    return %arg0, %c0_i32 : i32, i32
  }
  func.func @transform_1(%arg0: i32) -> (i32, i32) {
    %c0_i32 = arith.constant 0 : i32
    %c0_i32_0 = arith.constant 0 : i32
    return %arg0, %c0_i32 : i32, i32
  }
  func.func @transform_2(%arg0: i32) -> (i32, i32, i32) {
    %c0_i32 = arith.constant 0 : i32
    %c0_i32_0 = arith.constant 0 : i32
    %c0_i32_1 = arith.constant 0 : i32
    return %arg0, %c0_i32, %c0_i32_0 : i32, i32, i32
  }
}

</mosaic_0001>

<llo_original>
// kernel: tpu_custom_call.1
$region0: #{tpu_custom_call.1}
  #allocation0 [shape = 'u32[]', space=smem, size = 0x4, offset = 0x4, fixed_abs, tag = 'smem constant byte address 0x4 - core index']
  #allocation1 [shape = 'u32[144,128]{1,0:T(1,128)}', space=vmem, size = 0x12000, scoped, tag = 'internal scratch']
  %s0 = inlined_call_operand.hbm [shape: bf16[60,512], index: 0, kind: input, shape index: {}]
  %s1 = inlined_call_operand.vmem [shape: s32[60,1], index: 1, kind: input, shape index: {}]
  %s2 = inlined_call_operand.hbm [shape: f32[4,8,128], index: 2, kind: output, shape index: {}]
  %s3 = sld [smem:[#allocation0]]
  $region45: #{tpu_custom_call.1} parent=0
    _
  %s5 = ssub.s32 1, %s3
  %s6 = scalar_select 0, %s5, %s3
  $region1: #{tpu_custom_call.1} parent=0
    #allocation2 [shape = 'u8[32768]{0}', space=vmem, size = 0x8000, scoped, tag = 'input window, operand 0']
    #allocation3 [shape = 's32[2]{0}', space=sflag, size = 0x8, scoped, tag = 'scoped memory for tpu_custom_call.1']
    #allocation4 [shape = 's32[2]{0}', space=sflag, size = 0x8, scoped, tag = 'scoped memory for tpu_custom_call.1']
    #allocation5 [shape = 'u8[8192]{0}', space=vmem, size = 0x2000, scoped, tag = 'output window, operand 0']
    %7 = vsyncpa [#allocation3], 0
    %s8 = scalar_lea.sflag [#allocation3], 1
    %9 = vsyncpa %s8, 0
    %10 = vsyncpa [#allocation4], 0
    %s11 = scalar_lea.sflag [#allocation4], 1
    %12 = vsyncpa %s11, 0
    loop: start=0, step=1, limit=6
    $region2: #{tpu_custom_call.1} parent=1 // loop_pre_header
      _
    $region3: #{tpu_custom_call.1} parent=1 // loop_header
      %s14 = sphi 0, %s18
      %p15 = scmp.ge.s32.totalorder %s14, 6
      %s24 = sphi 0, %s26
      %s27 = sphi 0, %s24
      %s28 = sphi 0, %s27
      %s44 = sphi 0, %s28
      %s50 = sphi 0, %s52
      %s53 = sphi 0, %s50
      %s54 = sphi 0, %s53
      %s70 = sphi 0, %s54
      %s76 = sphi 0, %s78
      %s79 = sphi 0, %s76
      %s80 = sphi 0, %s79
      %s96 = sphi 0, %s80
    $region4: #{tpu_custom_call.1} parent=1 // loop_header_branch
      %17 = sbr.rel (%p15) target = $region8
    $region5: #{tpu_custom_call.1} parent=1 // loop_body
      %s19 = ssub.s32 %s14, 1
      %s20 = ssub.s32 %s14, 2
      %s21 = sadd.s32 %s14, 1
      %s22 = ssub.s32 %s14, %s21
      %p23 = scmp.eq.s32.totalorder %s22, 0
      %s25 = sadd.s32 %s24, 1
      %s26 = scalar_select %p23, %s24, %s25
      %p29 = pneg %p23
      %p30 = scmp.eq.s32.totalorder %s14, 3
      %p31 = por %p29, %p30
      %p32 = scmp.ne.s32.totalorder %s24, %s27
      %p33 = scmp.eq.s32.totalorder %s14, 0
      %p34 = por %p32, %p33
      %p35 = scmp.ne.s32.totalorder %s24, %s27
      %p36 = scmp.eq.s32.totalorder %s19, 3
      %p37 = por %p35, %p36
      %p38 = scmp.ne.s32.totalorder %s27, %s28
      %p39 = scmp.eq.s32.totalorder %s19, 0
      %p40 = por %p38, %p39
      %p41 = scmp.ne.s32.totalorder %s27, %s28
      %p42 = scmp.eq.s32.totalorder %s20, 3
      %p43 = por %p41, %p42
      %p45 = scmp.ne.s32.totalorder %s28, %s44
      %p46 = scmp.eq.s32.totalorder %s20, 0
      %p47 = por %p45, %p46
      %s48 = ssub.s32 %s14, %s21
      %p49 = scmp.eq.s32.totalorder %s48, 0
      %s51 = sadd.s32 %s50, 1
      %s52 = scalar_select %p49, %s50, %s51
      %p55 = pneg %p49
      %p56 = scmp.eq.s32.totalorder %s14, 3
      %p57 = por %p55, %p56
      %p58 = scmp.ne.s32.totalorder %s50, %s53
      %p59 = scmp.eq.s32.totalorder %s14, 0
      %p60 = por %p58, %p59
      %p61 = scmp.ne.s32.totalorder %s50, %s53
      %p62 = scmp.eq.s32.totalorder %s19, 3
      %p63 = por %p61, %p62
      %p64 = scmp.ne.s32.totalorder %s53, %s54
      %p65 = scmp.eq.s32.totalorder %s19, 0
      %p66 = por %p64, %p65
      %p67 = scmp.ne.s32.totalorder %s53, %s54
      %p68 = scmp.eq.s32.totalorder %s20, 3
      %p69 = por %p67, %p68
      %p71 = scmp.ne.s32.totalorder %s54, %s70
      %p72 = scmp.eq.s32.totalorder %s20, 0
      %p73 = por %p71, %p72
      %s74 = ssub.s32 %s14, %s21
      %p75 = scmp.eq.s32.totalorder %s74, 0
      %s77 = sadd.s32 %s76, 1
      %s78 = scalar_select %p75, %s76, %s77
      %p81 = pneg %p75
      %p82 = scmp.eq.s32.totalorder %s14, 3
      %p83 = por %p81, %p82
      %p84 = scmp.ne.s32.totalorder %s76, %s79
      %p85 = scmp.eq.s32.totalorder %s14, 0
      %p86 = por %p84, %p85
      %p87 = scmp.ne.s32.totalorder %s76, %s79
      %p88 = scmp.eq.s32.totalorder %s19, 3
      %p89 = por %p87, %p88
      %p90 = scmp.ne.s32.totalorder %s79, %s80
      %p91 = scmp.eq.s32.totalorder %s19, 0
      %p92 = por %p90, %p91
      %p93 = scmp.ne.s32.totalorder %s79, %s80
      %p94 = scmp.eq.s32.totalorder %s20, 3
      %p95 = por %p93, %p94
      %p97 = scmp.ne.s32.totalorder %s80, %s96
      %p98 = scmp.eq.s32.totalorder %s20, 0
      %p99 = por %p97, %p98
      %p100 = scmp.le.s32.totalorder 1, %s14
      %p101 = scmp.lt.s32.totalorder %s14, 5
      %p102 = pnand %p100, %p101
      %p103 = pneg %p102
      // Predicated region
      $region9: #{tpu_custom_call.1} parent=5 // pred_check
        _
      $region10: #{tpu_custom_call.1} parent=5 // pred_check_branch
        %105 = sbr.rel (%p102) target = $region12
      $region11: #{tpu_custom_call.1} parent=5 // pred_region
        %s106 = ssub.s32 %s14, 1
      $region12: #{tpu_custom_call.1} parent=5 // pred_fallthru
        _
      %p107 = scmp.lt.s32.totalorder %s14, 4
      // Predicated region
      $region13: #{tpu_custom_call.1} parent=5 // pred_check
        %p108 = pneg %p107
      $region14: #{tpu_custom_call.1} parent=5 // pred_check_branch
        %110 = sbr.rel (%p108) target = $region16
      $region15: #{tpu_custom_call.1} parent=5 // pred_region
        // Predicated region
        $region17: #{tpu_custom_call.1} parent=15 // pred_check
          %p111 = pneg %p34
        $region18: #{tpu_custom_call.1} parent=15 // pred_check_branch
          %113 = sbr.rel (%p111) target = $region20
        $region19: #{tpu_custom_call.1} parent=15 // pred_region
          %s114 = sand.u32 %s24, 1
          %s115 = scalar_lea.sflag [#allocation3], %s114
          %s116 = sand.u32 %s24, 1
          %s117 = smul.addr %s116, 32
          %s118 = scalar_lea.vmem [#allocation2], %s117
          %s119 = smul.u32 2, %s14
          %s121 = ssub.s32 512, 512
          %122 = vsyncadd %s115, %s121
          %s123 = smul.addr %s119, 4
          %s124 = smul.addr %s123, 64
          %s125 = scalar_lea.hbm %s0, %s124
          %s126 = sshll.u32 %s118, 4
          %s127 = int_to_ptr.vmem [resolvable:$true] %s126
          %132 = dma.hbm_to_vmem [thread:$0]  %s125, 512, %s127, %s115, 256, 256, 16
        $region20: #{tpu_custom_call.1} parent=15 // pred_fallthru
          _
        // Predicated region
        $region21: #{tpu_custom_call.1} parent=15 // pred_check
          %p133 = pneg %p60
        $region22: #{tpu_custom_call.1} parent=15 // pred_check_branch
          %135 = sbr.rel (%p133) target = $region24
        $region23: #{tpu_custom_call.1} parent=15 // pred_region
          %s136 = smul.u32 2, %s14
          %p137 = scmp.lt.s32.totalorder %s136, 7
          %s138 = scalar_select %p137, %s136, 7
          %s139 = smul.addr %s138, 8
          %s140 = scalar_lea.vmem %s1, %s139
          %s141 = smul.u32 2, %s14
        $region24: #{tpu_custom_call.1} parent=15 // pred_fallthru
          _
      $region16: #{tpu_custom_call.1} parent=5 // pred_fallthru
        _
      %p142 = scmp.le.s32.totalorder 1, %s14
      %p143 = scmp.lt.s32.totalorder %s14, 5
      %p144 = pnand %p142, %p143
      %p145 = pneg %p144
      // Predicated region
      $region25: #{tpu_custom_call.1} parent=5 // pred_check
        _
      $region26: #{tpu_custom_call.1} parent=5 // pred_check_branch
        %147 = sbr.rel (%p144) target = $region28
      $region27: #{tpu_custom_call.1} parent=5 // pred_region
        %s148 = ssub.s32 %s14, 1
        %s149 = sand.u32 %s27, 1
        %s150 = scalar_lea.sflag [#allocation3], %s149
        %s151 = sand.u32 %s27, 1
        %s152 = smul.addr %s151, 32
        %s153 = scalar_lea.vmem [#allocation2], %s152
        // Predicated region
        $region29: #{tpu_custom_call.1} parent=27 // pred_check
          %p154 = pneg %p40
        $region30: #{tpu_custom_call.1} parent=27 // pred_check_branch
          %156 = sbr.rel (%p154) target = $region32
        $region31: #{tpu_custom_call.1} parent=27 // pred_region
          %157 = dma.done %s150, 512
        $region32: #{tpu_custom_call.1} parent=27 // pred_fallthru
          _
        %s158 = sand.u32 %s27, 1
        %s159 = scalar_lea.sflag [#allocation3], %s158
        %s160 = sand.u32 %s27, 1
        %s161 = smul.addr %s160, 32
        %s162 = scalar_lea.vmem [#allocation2], %s161
        %p163 = pneg %p40
        %p164 = pneg %p37
        %s165 = smul.u32 2, %s19
        %p166 = scmp.lt.s32.totalorder %s165, 7
        %s167 = scalar_select %p166, %s165, 7
        %s168 = smul.addr %s167, 8
        %s169 = scalar_lea.vmem %s1, %s168
        %p170 = pneg %p66
        %p171 = pneg %p63
        %p172 = pneg %p92
        %p173 = pneg %p89
        %s174 = sand.u32 %s79, 1
        %s175 = scalar_lea.sflag [#allocation4], %s174
        %s176 = sand.u32 %s79, 1
        %s177 = smul.addr %s176, 8
        %s178 = scalar_lea.vmem [#allocation5], %s177
        %s179 = smul.u32 2, %s19
        %s180 = smul.u32 2, %s19
        %p181 = scmp.lt.s32.totalorder %s180, 7
        %s182 = scalar_select %p181, %s180, 7
        %s183 = smul.addr %s182, 8
        %s184 = scalar_lea.vmem %s1, %s183
        %s185 = smul.u32 2, %s19
        %v186 = vld [vmem:[%s153] sm:$0xff]
        %v187 = vld [vmem:[%s153 + $0x8] sm:$0xff]
        %v188 = vld [vmem:[%s153 + $0x10] sm:$0xff]
        %v189 = vld [vmem:[%s153 + $0x18] sm:$0xff]
        %v190 = vunpack.c.l.bf16 %v186
        %v191 = vunpack.c.h.bf16 %v186
        %v192 = vunpack.c.l.bf16 %v187
        %v193 = vunpack.c.h.bf16 %v187
        %v194 = vunpack.c.l.bf16 %v188
        %v195 = vunpack.c.h.bf16 %v188
        %v196 = vunpack.c.l.bf16 %v189
        %v197 = vunpack.c.h.bf16 %v189
        %v198 = vld [vmem:[%s184] sm:$0xff]
        %v199 = vld [vmem:[%s184 + $0x8] sm:$0xff]
        %v200 = vlaneseq
        %v201 = vand.u32 %v200, 127
        %v202 = vadd.s32 %v201, 128
        %v203 = vadd.s32 %v201, 256
        %v204 = vadd.s32 %v201, 384
        %v205 = vlaneseq
        %v206 = vshrl.u32 %v205, 7
        %v207 = vadd.s32 %v206, 8
        %v208 = vadd.f32 %v190, %v191
        %v209 = vadd.f32 %v208, %v192
        %v210 = vadd.f32 %v209, %v193
        %211 = vadd.xlane.f32.xlu0 %v210
        %v212 = vpop.xlane.xlu0 %211
        %v213 = vadd.f32 %v194, %v195
        %v214 = vadd.f32 %v213, %v196
        %v215 = vadd.f32 %v214, %v197
        %216 = vadd.xlane.f32.xlu0 %v215
        %v217 = vpop.xlane.xlu0 %216
        %218 = vset.pattern.permute.xlu0 0
        %219 = vperm.xlu0 %218, %v198
        %v220 = vpop.permute.xlu0 %219
        %221 = vset.pattern.permute.xlu0 0
        %222 = vperm.xlu0 %221, %v199
        %v223 = vpop.permute.xlu0 %222
        %vm224 = vcmp.eq.s32.totalorder %v201, %v220
        %vm225 = vcmp.eq.s32.totalorder %v202, %v220
        %vm226 = vcmp.eq.s32.totalorder %v203, %v220
        %vm227 = vcmp.eq.s32.totalorder %v204, %v220
        %vm228 = vcmp.eq.s32.totalorder %v201, %v223
        %vm229 = vcmp.eq.s32.totalorder %v202, %v223
        %vm230 = vcmp.eq.s32.totalorder %v203, %v223
        %vm231 = vcmp.eq.s32.totalorder %v204, %v223
        %v232 = vsel %vm224, %v190, 0.0
        %v233 = vsel %vm225, %v191, 0.0
        %v234 = vsel %vm226, %v192, 0.0
        %v235 = vsel %vm227, %v193, 0.0
        %v236 = vsel %vm228, %v194, 0.0
        %v237 = vsel %vm229, %v195, 0.0
        %v238 = vsel %vm230, %v196, 0.0
        %v239 = vsel %vm231, %v197, 0.0
        %v240 = vadd.f32 %v232, %v233
        %v241 = vadd.f32 %v240, %v234
        %v242 = vadd.f32 %v241, %v235
        %243 = vadd.xlane.f32.xlu0 %v242
        %v244 = vpop.xlane.xlu0 %243
        %v245 = vadd.f32 %v236, %v237
        %v246 = vadd.f32 %v245, %v238
        %v247 = vadd.f32 %v246, %v239
        %248 = vadd.xlane.f32.xlu0 %v247
        %v249 = vpop.xlane.xlu0 %248
        %v250 = vmul.f32 %v244, 0.9
        %v251 = vmul.f32 %v249, 0.9
        %v252 = vsub.f32 -0.94852406, %v250
        %v253 = vsub.f32 -0.94852406, %v251
        %v254 = vsub.f32 %v212, %v244
        %v255 = vsub.f32 %v217, %v249
        %v256 = vsub.f32 %v254, %v190
        %v257 = vsub.f32 %v255, %v194
        %v258 = vmul.f32 %v256, 0.00019607843
        %v259 = vmul.f32 %v257, 0.00019607843
        %v260 = vsub.f32 %v252, %v258
        %v261 = vsub.f32 %v253, %v259
        %s262 = smul.u32 %s19, 16
        %v263 = vstv %s262
        %v264 = vadd.s32 %v263, %v206
        %v265 = vadd.s32 %v263, %v207
        %vm266 = vcmp.lt.s32.totalorder %v264, 60
        %vm267 = vcmp.lt.s32.totalorder %v265, 60
        %vm268 = vcmp.ne.s32.totalorder %v198, 0
        %vm269 = vcmp.ne.s32.totalorder %v199, 0
        %vm270 = vmand %vm266, %vm268
        %vm271 = vmand %vm267, %vm269
        %v272 = vsel %vm270, %v260, 0.0
        %v273 = vsel %vm271, %v261, 0.0
        %vm274 = vcmask 7168
        %v275 = vsel %vm274, %v272, 0.0
        %v276 = vsel %vm274, %v273, 0.0
        %v277 = vadd.f32 %v275, %v276
        %278 = vadd.xlane.f32.xlu0 %v277
        %v279 = vpop.xlane.xlu0 %278
        %v280 = vrot.slane %v279, 4
        %v281 = vadd.f32 %v279, %v280
        %v282 = vrot.slane %v281, 2
        %v283 = vadd.f32 %v281, %v282
        %v284 = vrot.slane %v283, 1
        %v285 = vadd.f32 %v283, %v284
        %s286 = vtos %v285
        %v287 = vstv %s286
        %288 = vst [vmem:[%s178] sm:$0xff] %v287
        %s289 = sand.u32 %s79, 1
        %s290 = scalar_lea.sflag [#allocation4], %s289
        %s291 = sand.u32 %s79, 1
        %s292 = smul.addr %s291, 8
        %s293 = scalar_lea.vmem [#allocation5], %s292
        // Predicated region
        $region33: #{tpu_custom_call.1} parent=27 // pred_check
          %p294 = pneg %p89
        $region34: #{tpu_custom_call.1} parent=27 // pred_check_branch
          %296 = sbr.rel (%p294) target = $region36
        $region35: #{tpu_custom_call.1} parent=27 // pred_region
          %s298 = ssub.s32 128, 128
          %299 = vsyncadd %s290, %s298
          %s300 = smul.addr %s19, 128
          %s301 = scalar_lea.hbm %s2, %s300
          %s303 = sshll.u32 %s293, 4
          %s304 = int_to_ptr.vmem [resolvable:$true] %s303
          %306 = dma.vmem_to_hbm [thread:$0]  %s304, 128, %s301, %s290
        $region36: #{tpu_custom_call.1} parent=27 // pred_fallthru
          _
      $region28: #{tpu_custom_call.1} parent=5 // pred_fallthru
        _
      %p307 = scmp.le.s32.totalorder 2, %s14
      // Predicated region
      $region37: #{tpu_custom_call.1} parent=5 // pred_check
        %p308 = pneg %p307
      $region38: #{tpu_custom_call.1} parent=5 // pred_check_branch
        %310 = sbr.rel (%p308) target = $region40
      $region39: #{tpu_custom_call.1} parent=5 // pred_region
        %s311 = ssub.s32 %s14, 2
        // Predicated region
        $region41: #{tpu_custom_call.1} parent=39 // pred_check
          %p312 = pneg %p95
        $region42: #{tpu_custom_call.1} parent=39 // pred_check_branch
          %314 = sbr.rel (%p312) target = $region44
        $region43: #{tpu_custom_call.1} parent=39 // pred_region
          %s315 = sand.u32 %s80, 1
          %s316 = scalar_lea.sflag [#allocation4], %s315
          %s317 = sand.u32 %s80, 1
          %s318 = smul.addr %s317, 8
          %s319 = scalar_lea.vmem [#allocation5], %s318
          %320 = dma.done %s316, 128
        $region44: #{tpu_custom_call.1} parent=39 // pred_fallthru
          _
      $region40: #{tpu_custom_call.1} parent=5 // pred_fallthru
        _
    $region6: #{tpu_custom_call.1} parent=1 // loop_footer
      %s18 = sadd.s32 1, %s14
    $region7: #{tpu_custom_call.1} parent=1 // loop_footer_branch
      %13 = sbr.rel target = $region3
    $region8: #{tpu_custom_call.1} parent=1 // loop_exit
      _
    %321 = vsyncpa [#allocation3], 1
    %s322 = scalar_lea.sflag [#allocation3], 1
    %323 = vsyncpa %s322, 1
    %324 = vsyncpa [#allocation4], 1
    %s325 = scalar_lea.sflag [#allocation4], 1
    %326 = vsyncpa %s325, 1

</llo_original>
